<compile_context>
chip_gen: v7x
topology: tpu7x:2x2x1
jax: 0.10.0
libtpu: 0.0.40
codegen_flags: <defaults>
</compile_context>

<pallas_src>
import math

import jax
import jax.numpy as jnp
from jax.experimental import pallas as pl
from jax.experimental.pallas import tpu as pltpu

_INV_SQRT2 = 1.0 / math.sqrt(2.0)


def _round_up(n, m):
    return ((n + m - 1) // m) * m


def _sublane_pack(dtype):
    # Sub-32-bit dtypes pack along sublanes: 8 rows for f32, 16 for bf16, 32 for int8.
    return max(8, 32 // jnp.dtype(dtype).itemsize)


def _vmem_capacity_bytes():
    try:
        return int(pltpu.get_tpu_info().vmem_capacity_bytes)
    except Exception:
        return 64 * 1024 * 1024  # conservative (v7x per-TensorCore VMEM)


def _pick_th(H, th_max):
    # Largest multiple-of-128 divisor of H that is <= th_max; else full H
    # (small models where H itself is the only clean tile).
    cands = [d for d in range(128, min(th_max, H) + 1, 128) if H % d == 0]
    return max(cands) if cands else H


def _gelu_f32(h):
    # Exact (erf) GELU in f32 -- matches torch.nn.GELU() default, and f32 math
    # is mandatory on v5e (no bf16 VPU/EUP).
    # TODO(synk): optional tanh-approx GELU (EUP tanh) if the VPU erf polynomial
    # becomes the binding slot on v6e once matmuls run at bf16 speed.
    return 0.5 * h * (1.0 + jax.lax.erf(h * jnp.float32(_INV_SQRT2)))


# ---------------------------------------------------------------------------
# Primary path: W1/W2 resident in VMEM, grid = (row tiles,), in-kernel H loop.
# ---------------------------------------------------------------------------
def _make_resident_kernel(th, n_chunks):
    def kernel(x_ref, w1_ref, b1_ref, w2_ref, b2_ref, o_ref):
        # x_ref: (tm, C)  w1_ref: (C, H)  b1_ref: (1, H)
        # w2_ref: (H, C)  b2_ref: (1, C)  o_ref: (tm, C)
        x = x_ref[...]
        # Fold the c_proj bias into the accumulator init.
        acc = jnp.broadcast_to(b2_ref[...].astype(jnp.float32),
                               (x.shape[0], o_ref.shape[1]))
        for j in range(n_chunks):  # static unroll; n_chunks kept small by th choice
            sl = slice(j * th, (j + 1) * th)
            # c_fc chunk: bf16 MXU operands, f32 accumulation.
            h = jnp.dot(x, w1_ref[:, sl], preferred_element_type=jnp.float32)
            h = _gelu_f32(h + b1_ref[:, sl].astype(jnp.float32))
            # c_proj chunk: hidden slab back to storage dtype for the MXU.
            acc = acc + jnp.dot(h.astype(w2_ref.dtype), w2_ref[sl, :],
                                preferred_element_type=jnp.float32)
        # Dropout: inference mode / p=0.0 -> identity.
        # TODO(synk): training-mode dropout via pltpu.prng_seed / prng_random_bits.
        o_ref[...] = acc.astype(o_ref.dtype)
    return kernel


# ---------------------------------------------------------------------------
# Fallback path: stream W1/W2 H-slices, grid = (row tiles, hidden tiles).
# ---------------------------------------------------------------------------
def _streaming_kernel(x_ref, w1_ref, b1_ref, w2_ref, b2_ref, o_ref, acc_ref):
    k = pl.program_id(1)

    @pl.when(k == 0)
    def _():
        acc_ref[...] = jnp.broadcast_to(
            b2_ref[...].astype(jnp.float32), acc_ref.shape)

    h = jnp.dot(x_ref[...], w1_ref[...], preferred_element_type=jnp.float32)
    h = _gelu_f32(h + b1_ref[...].astype(jnp.float32))
    acc_ref[...] += jnp.dot(h.astype(w2_ref.dtype), w2_ref[...],
                            preferred_element_type=jnp.float32)

    @pl.when(k == pl.num_programs(1) - 1)
    def _():
        o_ref[...] = acc_ref[...].astype(o_ref.dtype)


def mlp_forward(x, w1, b1, w2, b2, *, tm=512, th=1024,
                compute_dtype=jnp.bfloat16, force_streaming=False):
    """nanoGPT MLP forward: dropout(c_proj(gelu(c_fc(x)))), dropout p=0.

    x: (B, T, C); w1: (C, 4C); b1: (4C,); w2: (4C, C); b2: (C,).
    Weights are stored pre-transposed as (in, out)."""
    B, T, C = x.shape
    H = w1.shape[1]
    M = B * T
    out_dtype = x.dtype

    cd = jnp.dtype(compute_dtype)
    pack = _sublane_pack(cd)

    # Row tile: rounded to the compute dtype's sublane pack; split into >= 2
    # tiles when M allows so the 'parallel' axis can feed both v7x TensorCores.
    tm = min(tm, _round_up(M, pack))
    if M >= 2 * pack and _round_up(M, tm) // tm < 2:
        tm = _round_up(pl.cdiv(M, 2), pack)
    m_pad = _round_up(M, tm)
    n_m = m_pad // tm

    # Hidden tile: largest multiple-of-128 divisor of H (never blows up to a
    # huge non-tiled H unless H itself is small / not 128-aligned).
    th = _pick_th(H, th)
    n_h = H // th

    # bf16 (or requested) MXU operands; biases + accumulation stay f32.
    x2d = x.reshape(M, C).astype(cd)
    if m_pad != M:
        x2d = jnp.pad(x2d, ((0, m_pad - M), (0, 0)))
    w1c = w1.astype(cd)
    w2c = w2.astype(cd)
    b1_2d = b1.reshape(1, H).astype(jnp.float32)
    b2_2d = b2.reshape(1, C).astype(jnp.float32)

    cd_size = cd.itemsize
    out_size = jnp.dtype(out_dtype).itemsize
    vmem_cap = _vmem_capacity_bytes()
    vmem_ceiling = int(0.85 * vmem_cap)          # headroom for Mosaic scratch

    w_bytes = 2 * C * H * cd_size                # W1 + W2, one copy
    bias_bytes = (H + C) * 4
    io_bytes = 2 * tm * C * (cd_size + out_size)  # double-buffered x / out tiles

    # Resident-weight budget: weights held in VMEM for the whole grid (counted
    # x2 to be safe about pipeline buffering) + transient hidden slab + f32 acc.
    resident_budget = int(1.5 * (2 * w_bytes + bias_bytes + io_bytes
                                 + tm * th * 4 + 2 * tm * C * 4))
    use_resident = (not force_streaming) and resident_budget <= vmem_ceiling

    if use_resident:
        kernel = _make_resident_kernel(th, n_h)
        grid_spec = pltpu.PrefetchScalarGridSpec(
            num_scalar_prefetch=0,
            grid=(n_m,),
            in_specs=[
                pl.BlockSpec((tm, C), lambda i: (i, 0)),   # x row tile
                pl.BlockSpec((C, H), lambda i: (0, 0)),    # W1 (resident)
                pl.BlockSpec((1, H), lambda i: (0, 0)),    # b1 (resident)
                pl.BlockSpec((H, C), lambda i: (0, 0)),    # W2 (resident)
                pl.BlockSpec((1, C), lambda i: (0, 0)),    # b2 (resident)
            ],
            out_specs=pl.BlockSpec((tm, C), lambda i: (i, 0)),
        )
        dim_sem = ("parallel",)
        vmem_bytes = resident_budget
        weight_bytes_hbm = w_bytes + bias_bytes            # fetched once
    else:
        kernel = _streaming_kernel
        grid_spec = pltpu.PrefetchScalarGridSpec(
            num_scalar_prefetch=0,
            grid=(n_m, n_h),
            in_specs=[
                pl.BlockSpec((tm, C), lambda i, k: (i, 0)),   # x row tile
                pl.BlockSpec((C, th), lambda i, k: (0, k)),   # W1 H-slice
                pl.BlockSpec((1, th), lambda i, k: (0, k)),   # b1 H-slice
                pl.BlockSpec((th, C), lambda i, k: (k, 0)),   # W2 H-slice
                pl.BlockSpec((1, C), lambda i, k: (0, 0)),    # b2 (resident)
            ],
            out_specs=pl.BlockSpec((tm, C), lambda i, k: (i, 0)),
            scratch_shapes=[pltpu.VMEM((tm, C), jnp.float32)],
        )
        dim_sem = ("parallel", "arbitrary")
        vmem_bytes = int(1.5 * (2 * (C * th + th * C) * cd_size + bias_bytes
                                + io_bytes + tm * th * 4 + tm * C * 4))
        # Weights are re-streamed from HBM for every M row tile.
        weight_bytes_hbm = n_m * (w_bytes + bias_bytes)

    vmem_bytes = max(vmem_bytes, 16 * 1024 * 1024)
    vmem_bytes = min(vmem_bytes, vmem_ceiling)

    cost = pl.CostEstimate(
        flops=4 * M * C * H,                     # two matmuls, 2*M*C*H each
        transcendentals=M * H,                   # one erf per hidden element
        bytes_accessed=int(M * C * (cd_size + out_size) + weight_bytes_hbm),
    )

    out2d = pl.pallas_call(
        kernel,
        out_shape=jax.ShapeDtypeStruct((m_pad, C), out_dtype),
        grid_spec=grid_spec,
        compiler_params=pltpu.CompilerParams(
            dimension_semantics=dim_sem,
            vmem_limit_bytes=vmem_bytes,
        ),
        cost_estimate=cost,
    )(x2d, w1c, b1_2d, w2c, b2_2d)

    return out2d[:M].reshape(B, T, C)


if __name__ == "__main__":
    # Small config: batch=2, seq=8, n_embd=32, hidden = 4*n_embd = 128,
    # bias=True, dropout=0.0 (inference).
    B, T, C = 2, 8, 32
    H = 4 * C

    key = jax.random.PRNGKey(0)
    kx, k1, kb1, k2, kb2 = jax.random.split(key, 5)

    x = jax.random.normal(kx, (B, T, C), dtype=jnp.float32)
    w1 = jax.random.normal(k1, (C, H), dtype=jnp.float32) * (1.0 / math.sqrt(C))
    b1 = jax.random.normal(kb1, (H,), dtype=jnp.float32) * 0.01
    w2 = jax.random.normal(k2, (H, C), dtype=jnp.float32) * (1.0 / math.sqrt(H))
    b2 = jax.random.normal(kb2, (C,), dtype=jnp.float32) * 0.01

    # Reference mirroring the kernel's numerics: bf16 MXU operands, f32
    # accumulation, f32 bias + exact-erf GELU.
    xb = x.reshape(-1, C).astype(jnp.bfloat16)
    w1b = w1.astype(jnp.bfloat16)
    w2b = w2.astype(jnp.bfloat16)
    h_ref = jnp.dot(xb, w1b, preferred_element_type=jnp.float32) + b1
    h_ref = 0.5 * h_ref * (1.0 + jax.lax.erf(h_ref * jnp.float32(_INV_SQRT2)))
    y_ref = jnp.dot(h_ref.astype(jnp.bfloat16), w2b,
                    preferred_element_type=jnp.float32) + b2
    y_ref = y_ref.astype(x.dtype).reshape(B, T, C)

    # Primary (VMEM-resident weights) path.
    out_resident = mlp_forward(x, w1, b1, w2, b2)
    jax.block_until_ready(out_resident)
    assert jnp.allclose(out_resident, y_ref, atol=1e-3, rtol=1e-3), \
        "resident-weight path mismatch vs reference"

    # Fallback (streamed weight slices) path -- exercised here for coverage.
    out_stream = mlp_forward(x, w1, b1, w2, b2, force_streaming=True)
    jax.block_until_ready(out_stream)
    assert jnp.allclose(out_stream, y_ref, atol=1e-3, rtol=1e-3), \
        "streaming path mismatch vs reference"

    print("KERNEL_OK")
</pallas_src>

<mosaic_0001>
module attributes {stable_mosaic.version = 11 : i64} {
  func.func @kernel(%arg0: i32, %arg1: memref<16x32xbf16, #tpu.memory_space<vmem>>, %arg2: memref<32x128xbf16, #tpu.memory_space<vmem>>, %arg3: memref<1x128xf32, #tpu.memory_space<vmem>>, %arg4: memref<128x32xbf16, #tpu.memory_space<vmem>>, %arg5: memref<1x32xf32, #tpu.memory_space<vmem>>, %arg6: memref<16x32xf32, #tpu.memory_space<vmem>>) attributes {dimension_semantics = [#tpu.dimension_semantics<parallel>], iteration_bounds = array<i64: 1>, scalar_prefetch = 0 : i64, scratch_operands = 0 : i64, tpu.core_type = #tpu.core_type<tc>, window_params = [{transform_indices = @transform_0, window_bounds = array<i64: 16, 32>}, {pipeline_mode = #tpu.pipeline_mode<synchronous>, transform_indices = @transform_1, window_bounds = array<i64: 32, 128>}, {pipeline_mode = #tpu.pipeline_mode<synchronous>, transform_indices = @transform_2, window_bounds = array<i64: 1, 128>}, {pipeline_mode = #tpu.pipeline_mode<synchronous>, transform_indices = @transform_3, window_bounds = array<i64: 128, 32>}, {pipeline_mode = #tpu.pipeline_mode<synchronous>, transform_indices = @transform_4, window_bounds = array<i64: 1, 32>}, {transform_indices = @transform_5, window_bounds = array<i64: 16, 32>}]} {
    %c0 = arith.constant 0 : index
    %c0_0 = arith.constant 0 : index
    %0 = vector.load %arg1[%c0, %c0_0] : memref<16x32xbf16, #tpu.memory_space<vmem>>, vector<16x32xbf16>
    %c0_1 = arith.constant 0 : index
    %c0_2 = arith.constant 0 : index
    %1 = vector.load %arg5[%c0_1, %c0_2] : memref<1x32xf32, #tpu.memory_space<vmem>>, vector<1x32xf32>
    %2 = vector.shape_cast %1 : vector<1x32xf32> to vector<1x32xf32>
    %3 = vector.broadcast %2 : vector<1x32xf32> to vector<16x32xf32>
    %c0_3 = arith.constant 0 : index
    %c0_4 = arith.constant 0 : index
    %4 = vector.load %arg2[%c0_3, %c0_4] : memref<32x128xbf16, #tpu.memory_space<vmem>>, vector<32x128xbf16>
    %cst = arith.constant dense<0.000000e+00> : vector<16x128xf32>
    %5 = tpu.matmul %0, %4, %cst {dimension_numbers = #tpu.dot_dimension_numbers<[1], [0], [0], [1], [0, 0, 1, 1], [], []>} : vector<16x32xbf16>, vector<32x128xbf16>, vector<16x128xf32> -> vector<16x128xf32>
    %c0_5 = arith.constant 0 : index
    %c0_6 = arith.constant 0 : index
    %6 = vector.load %arg3[%c0_5, %c0_6] : memref<1x128xf32, #tpu.memory_space<vmem>>, vector<1x128xf32>
    %7 = vector.broadcast %6 : vector<1x128xf32> to vector<16x128xf32>
    %8 = arith.addf %5, %7 : vector<16x128xf32>
    %cst_7 = arith.constant 5.000000e-01 : f32
    %9 = vector.broadcast %cst_7 : f32 to vector<16x128xf32>
    %10 = arith.mulf %9, %8 : vector<16x128xf32>
    %cst_8 = arith.constant 0.707106769 : f32
    %11 = vector.broadcast %cst_8 : f32 to vector<16x128xf32>
    %12 = arith.mulf %8, %11 : vector<16x128xf32>
    %13 = math.erf %12 : vector<16x128xf32>
    %cst_9 = arith.constant 1.000000e+00 : f32
    %14 = vector.broadcast %cst_9 : f32 to vector<16x128xf32>
    %15 = arith.addf %14, %13 : vector<16x128xf32>
    %16 = arith.mulf %10, %15 : vector<16x128xf32>
    %17 = arith.truncf %16 : vector<16x128xf32> to vector<16x128xbf16>
    %c0_10 = arith.constant 0 : index
    %c0_11 = arith.constant 0 : index
    %18 = vector.load %arg4[%c0_10, %c0_11] : memref<128x32xbf16, #tpu.memory_space<vmem>>, vector<128x32xbf16>
    %cst_12 = arith.constant dense<0.000000e+00> : vector<16x32xf32>
    %19 = tpu.matmul %17, %18, %cst_12 {dimension_numbers = #tpu.dot_dimension_numbers<[1], [0], [0], [1], [0, 0, 1, 1], [], []>} : vector<16x128xbf16>, vector<128x32xbf16>, vector<16x32xf32> -> vector<16x32xf32>
    %20 = arith.addf %3, %19 : vector<16x32xf32>
    %c0_13 = arith.constant 0 : index
    %c0_14 = arith.constant 0 : index
    %21 = vector.load %arg6[%c0_13, %c0_14] : memref<16x32xf32, #tpu.memory_space<vmem>>, vector<16x32xf32>
    tpu.vector_store %arg6[%c0_13, %c0_14], %20 {strides = array<i32>} : memref<16x32xf32, #tpu.memory_space<vmem>>, vector<16x32xf32>,
    return
  }
  func.func @transform_0(%arg0: i32) -> (i32, i32) {
    %c0_i32 = arith.constant 0 : i32
    %c0_i32_0 = arith.constant 0 : i32
    return %arg0, %c0_i32 : i32, i32
  }
  func.func @transform_1(%arg0: i32) -> (i32, i32) {
    %c0_i32 = arith.constant 0 : i32
    %c0_i32_0 = arith.constant 0 : i32
    %c0_i32_1 = arith.constant 0 : i32
    return %c0_i32, %c0_i32_0 : i32, i32
  }
  func.func @transform_2(%arg0: i32) -> (i32, i32) {
    %c0_i32 = arith.constant 0 : i32
    %c0_i32_0 = arith.constant 0 : i32
    %c0_i32_1 = arith.constant 0 : i32
    return %c0_i32, %c0_i32_0 : i32, i32
  }
  func.func @transform_3(%arg0: i32) -> (i32, i32) {
    %c0_i32 = arith.constant 0 : i32
    %c0_i32_0 = arith.constant 0 : i32
    %c0_i32_1 = arith.constant 0 : i32
    return %c0_i32, %c0_i32_0 : i32, i32
  }
  func.func @transform_4(%arg0: i32) -> (i32, i32) {
    %c0_i32 = arith.constant 0 : i32
    %c0_i32_0 = arith.constant 0 : i32
    %c0_i32_1 = arith.constant 0 : i32
    return %c0_i32, %c0_i32_0 : i32, i32
  }
  func.func @transform_5(%arg0: i32) -> (i32, i32) {
    %c0_i32 = arith.constant 0 : i32
    %c0_i32_0 = arith.constant 0 : i32
    return %arg0, %c0_i32 : i32, i32
  }
}

</mosaic_0001>

<llo_original>
// kernel: tpu_custom_call.1
$region0: #{tpu_custom_call.1}
  #allocation0 [shape = 'u32[]', space=smem, size = 0x4, offset = 0x4, fixed_abs, tag = 'smem constant byte address 0x4 - core index']
  #allocation1 [shape = 'u32[144,128]{1,0:T(1,128)}', space=vmem, size = 0x12000, scoped, tag = 'internal scratch']
  %s0 = inlined_call_operand.vmem [shape: bf16[16,32], index: 0, kind: input, shape index: {}]
  %s1 = inlined_call_operand.vmem [shape: bf16[32,128], index: 1, kind: input, shape index: {}]
  %s2 = inlined_call_operand.vmem [shape: f32[1,128], index: 2, kind: input, shape index: {}]
  %s3 = inlined_call_operand.vmem [shape: bf16[128,32], index: 3, kind: input, shape index: {}]
  %s4 = inlined_call_operand.vmem [shape: f32[1,32], index: 4, kind: input, shape index: {}]
  %s5 = inlined_call_operand.hbm [shape: f32[16,32], index: 5, kind: output, shape index: {}]
  %s6 = sld [smem:[#allocation0]]
  $region30: #{tpu_custom_call.1} parent=0
    _
  %s8 = ssub.s32 1, %s6
  %s9 = scalar_select 0, %s8, %s6
  $region1: #{tpu_custom_call.1} parent=0
    #allocation2 [shape = 'u8[8192]{0}', space=vmem, size = 0x2000, scoped, tag = 'output window, operand 0, single buffered']
    #allocation3 [shape = 's32[1]{0}', space=sflag, size = 0x4, scoped, tag = 'scoped memory for tpu_custom_call.1']
    %10 = vsyncpa [#allocation3], 0
    // Predicated region
    $region2: #{tpu_custom_call.1} parent=1 // pred_check
      _
    $region3: #{tpu_custom_call.1} parent=1 // pred_check_branch
      %12 = sbr.rel (0) target = $region5
    $region4: #{tpu_custom_call.1} parent=1 // pred_region
      _
    $region5: #{tpu_custom_call.1} parent=1 // pred_fallthru
      _
    // Predicated region
    $region6: #{tpu_custom_call.1} parent=1 // pred_check
      _
    $region7: #{tpu_custom_call.1} parent=1 // pred_check_branch
      %14 = sbr.rel (0) target = $region9
    $region8: #{tpu_custom_call.1} parent=1 // pred_region
      _
    $region9: #{tpu_custom_call.1} parent=1 // pred_fallthru
      _
    // Predicated region
    $region10: #{tpu_custom_call.1} parent=1 // pred_check
      _
    $region11: #{tpu_custom_call.1} parent=1 // pred_check_branch
      %16 = sbr.rel (0) target = $region13
    $region12: #{tpu_custom_call.1} parent=1 // pred_region
      _
    $region13: #{tpu_custom_call.1} parent=1 // pred_fallthru
      _
    // Predicated region
    $region14: #{tpu_custom_call.1} parent=1 // pred_check
      _
    $region15: #{tpu_custom_call.1} parent=1 // pred_check_branch
      %18 = sbr.rel (0) target = $region17
    $region16: #{tpu_custom_call.1} parent=1 // pred_region
      _
    $region17: #{tpu_custom_call.1} parent=1 // pred_fallthru
      _
    // Predicated region
    $region18: #{tpu_custom_call.1} parent=1 // pred_check
      _
    $region19: #{tpu_custom_call.1} parent=1 // pred_check_branch
      %20 = sbr.rel (0) target = $region21
    $region20: #{tpu_custom_call.1} parent=1 // pred_region
      _
    $region21: #{tpu_custom_call.1} parent=1 // pred_fallthru
      _
    %v22 = vld [vmem:[%s0] sm:$0xf]
    %v23 = vld [vmem:[%s0 + $0x4] sm:$0xf]
    %v24 = vld [vmem:[%s4] sm:$0x1]
    %v26 = vlaneseq
    %v27 = vshrl.u32 %v26, 7
    %v28 = vsub.s32 0, %v27
    %v29 = vrot.slane %v24, %v28
    %v31 = vld [vmem:[%s1] sm:$0xf]
    %v32 = vld [vmem:[%s1 + $0x4] sm:$0xf]
    %v33 = vld [vmem:[%s1 + $0x8] sm:$0xf]
    %v34 = vld [vmem:[%s1 + $0xc] sm:$0xf]
    %v35 = vld [vmem:[%s2] sm:$0x1]
    %v37 = vlaneseq
    %v38 = vshrl.u32 %v37, 7
    %v39 = vsub.s32 0, %v38
    %v40 = vrot.slane %v35, %v39
    %v44 = vunpack.c.l.b16 %v22
    %v45 = vunpack.c.l.b16 %v23
    %v46 = vpack.c.b16 %v45, %v44
    %v51 = vunpack.c.l.b16 %v31
    %v52 = vunpack.c.l.b16 %v32
    %v53 = vunpack.c.l.b16 %v33
    %v54 = vunpack.c.l.b16 %v34
    %v55 = vpack.c.b16 %v52, %v51
    %v56 = vpack.c.b16 %v54, %v53
    %vm59 = vcmask 261120
    %v61 = vsel %vm59, %v46, 0
    %63 = vmatprep.subr.bf16.mxu0 0
    %64 = vmatpush1.bf16.msra.mxu0 %v55
    %65 = vmatprep.subr.bf16.mxu0 0
    %66 = vmatpush1.bf16.msra.mxu0 %v56
    %67 = vmatprep.subr.bf16.mxu0 0
    %68 = vmatpush1.bf16.msra.mxu0 0
    %69 = vmatprep.subr.bf16.mxu0 0
    %70 = vmatpush1.bf16.msra.mxu0 0
    %71 = vmatprep.subr.bf16.mxu0 0
    %72 = vmatpush1.bf16.msra.mxu0 0
    %73 = vmatprep.subr.bf16.mxu0 0
    %74 = vmatpush1.bf16.msra.mxu0 0
    %75 = vmatprep.subr.bf16.mxu0 0
    %76 = vmatpush1.bf16.msra.mxu0 0
    %77 = vmatprep.subr.bf16.mxu0 0
    %78 = vmatpush1.bf16.msra.mxu0 0
    %79 = vmatprep.subr.bf16.mxu0 0
    %80 = vmatpush1.bf16.msra.mxu0 0
    %81 = vmatprep.subr.bf16.mxu0 0
    %82 = vmatpush1.bf16.msra.mxu0 0
    %83 = vmatprep.subr.bf16.mxu0 0
    %84 = vmatpush1.bf16.msra.mxu0 0
    %85 = vmatprep.subr.bf16.mxu0 0
    %86 = vmatpush1.bf16.msra.mxu0 0
    %87 = vmatprep.subr.bf16.mxu0 0
    %88 = vmatpush1.bf16.msra.mxu0 0
    %89 = vmatprep.subr.bf16.mxu0 0
    %90 = vmatpush1.bf16.msra.mxu0 0
    %91 = vmatprep.subr.bf16.mxu0 0
    %92 = vmatpush1.bf16.msra.mxu0 0
    %93 = vmatprep.subr.bf16.mxu0 0
    %94 = vmatpush1.bf16.msra.mxu0 0
    %95 = vmatprep.mubr.bf16.mxu0 0
    %96 = vmatmul.mubr.bf16.gmra.mrb[0].mxu0 %v61
    %v97 = vpop.f32.mrb[0].mxu0
    %v98 = vadd.f32 %v40, %v97
    %v99 = vpop.f32.mrb[0].mxu0
    %v100 = vpop.f32.mrb[0].mxu0
    %v101 = vadd.f32 %v40, %v100
    %v102 = vpop.f32.mrb[0].mxu0
    %103 = vdwg.mxu0
    %v104 = vmul.f32 %v98, 0.5
    %v105 = vmul.f32 %v101, 0.5
    %v106 = vmul.f32 %v98, 0.70710677
    %v107 = vmul.f32 %v101, 0.70710677
    %v108 = verf.f32.pop %v106
    %v109 = verf.f32.pop %v107
    %v110 = vadd.f32 %v108, 1.0
    %v111 = vadd.f32 %v109, 1.0
    %v112 = vmul.f32 %v104, %v110
    %v113 = vmul.f32 %v105, %v111
    %v114 = vpack.c.bf16 %v113, %v112
    %v115 = vld [vmem:[%s3] sm:$0xf]
    %v116 = vld [vmem:[%s3 + $0x4] sm:$0xf]
    %v117 = vld [vmem:[%s3 + $0x8] sm:$0xf]
    %v118 = vld [vmem:[%s3 + $0xc] sm:$0xf]
    %v119 = vld [vmem:[%s3 + $0x10] sm:$0xf]
    %v120 = vld [vmem:[%s3 + $0x14] sm:$0xf]
    %v121 = vld [vmem:[%s3 + $0x18] sm:$0xf]
    %v122 = vld [vmem:[%s3 + $0x1c] sm:$0xf]
    %v123 = vld [vmem:[%s3 + $0x20] sm:$0xf]
    %v124 = vld [vmem:[%s3 + $0x24] sm:$0xf]
    %v125 = vld [vmem:[%s3 + $0x28] sm:$0xf]
    %v126 = vld [vmem:[%s3 + $0x2c] sm:$0xf]
    %v127 = vld [vmem:[%s3 + $0x30] sm:$0xf]
    %v128 = vld [vmem:[%s3 + $0x34] sm:$0xf]
    %v129 = vld [vmem:[%s3 + $0x38] sm:$0xf]
    %v130 = vld [vmem:[%s3 + $0x3c] sm:$0xf]
    %v147 = vunpack.c.l.b16 %v115
    %v148 = vunpack.c.l.b16 %v116
    %v149 = vunpack.c.l.b16 %v117
    %v150 = vunpack.c.l.b16 %v118
    %v151 = vunpack.c.l.b16 %v119
    %v152 = vunpack.c.l.b16 %v120
    %v153 = vunpack.c.l.b16 %v121
    %v154 = vunpack.c.l.b16 %v122
    %v155 = vunpack.c.l.b16 %v123
    %v156 = vunpack.c.l.b16 %v124
    %v157 = vunpack.c.l.b16 %v125
    %v158 = vunpack.c.l.b16 %v126
    %v159 = vunpack.c.l.b16 %v127
    %v160 = vunpack.c.l.b16 %v128
    %v161 = vunpack.c.l.b16 %v129
    %v162 = vunpack.c.l.b16 %v130
    %v163 = vpack.c.b16 %v148, %v147
    %v164 = vpack.c.b16 %v150, %v149
    %v165 = vpack.c.b16 %v152, %v151
    %v166 = vpack.c.b16 %v154, %v153
    %v167 = vpack.c.b16 %v156, %v155
    %v168 = vpack.c.b16 %v158, %v157
    %v169 = vpack.c.b16 %v160, %v159
    %v170 = vpack.c.b16 %v162, %v161
    %179 = vmatprep.subr.bf16.mxu0 0
    %180 = vmatpush1.bf16.msra.mxu0 %v163
    %181 = vmatprep.subr.bf16.mxu0 0
    %182 = vmatpush1.bf16.msra.mxu0 %v164
    %183 = vmatprep.subr.bf16.mxu0 0
    %184 = vmatpush1.bf16.msra.mxu0 %v165
    %185 = vmatprep.subr.bf16.mxu0 0
    %186 = vmatpush1.bf16.msra.mxu0 %v166
    %187 = vmatprep.subr.bf16.mxu0 0
    %188 = vmatpush1.bf16.msra.mxu0 %v167
    %189 = vmatprep.subr.bf16.mxu0 0
    %190 = vmatpush1.bf16.msra.mxu0 %v168
    %191 = vmatprep.subr.bf16.mxu0 0
    %192 = vmatpush1.bf16.msra.mxu0 %v169
    %193 = vmatprep.subr.bf16.mxu0 0
    %194 = vmatpush1.bf16.msra.mxu0 %v170
    %195 = vmatprep.subr.bf16.mxu0 0
    %196 = vmatpush1.bf16.msra.mxu0 0
    %197 = vmatprep.subr.bf16.mxu0 0
    %198 = vmatpush1.bf16.msra.mxu0 0
    %199 = vmatprep.subr.bf16.mxu0 0
    %200 = vmatpush1.bf16.msra.mxu0 0
    %201 = vmatprep.subr.bf16.mxu0 0
    %202 = vmatpush1.bf16.msra.mxu0 0
    %203 = vmatprep.subr.bf16.mxu0 0
    %204 = vmatpush1.bf16.msra.mxu0 0
    %205 = vmatprep.subr.bf16.mxu0 0
    %206 = vmatpush1.bf16.msra.mxu0 0
    %207 = vmatprep.subr.bf16.mxu0 0
    %208 = vmatpush1.bf16.msra.mxu0 0
    %209 = vmatprep.subr.bf16.mxu0 0
    %210 = vmatpush1.bf16.msra.mxu0 0
    %211 = vmatprep.mubr.bf16.mxu0 0
    %212 = vmatmul.mubr.bf16.gmra.mrb[0].mxu0 %v114
    %v213 = vpop.f32.mrb[0].mxu0
    %v214 = vadd.f32 0.0, %v213
    %v215 = vpop.f32.mrb[0].mxu0
    %v216 = vpop.f32.mrb[0].mxu0
    %v217 = vadd.f32 0.0, %v216
    %v218 = vpop.f32.mrb[0].mxu0
    %219 = vdwg.mxu0
    %v220 = vadd.f32 %v29, %v214
    %v221 = vadd.f32 %v29, %v217
    %222 = vst.msk [vmem:[#allocation2] sm:$0xff] %vm59, %v220
    %223 = vst.msk [vmem:[#allocation2 + $0x8] sm:$0xff] %vm59, %v221
    // Predicated region
    $region22: #{tpu_custom_call.1} parent=1 // pred_check
      _
    $region23: #{tpu_custom_call.1} parent=1 // pred_check_branch
      %225 = sbr.rel (0) target = $region25
    $region24: #{tpu_custom_call.1} parent=1 // pred_region
      %s227 = ssub.s32 256, 256
      %228 = vsyncadd [#allocation3], %s227
      %s229 = sshll.u32 [#allocation2], 4
      %s230 = int_to_ptr.vmem [resolvable:$true] %s229
      %235 = dma.vmem_to_hbm [thread:$0]  %s230, 256, %s5, [#allocation3], 128, 128, 8
    $region25: #{tpu_custom_call.1} parent=1 // pred_fallthru
      _
    // Predicated region
    $region26: #{tpu_custom_call.1} parent=1 // pred_check
      _
    $region27: #{tpu_custom_call.1} parent=1 // pred_check_branch
      %237 = sbr.rel (0) target = $region29
    $region28: #{tpu_custom_call.1} parent=1 // pred_region
      %238 = dma.done [#allocation3], 256
    $region29: #{tpu_custom_call.1} parent=1 // pred_fallthru
      _
    %239 = vsyncpa [#allocation3], 1

</llo_original>
